<compile_context>
chip_gen: v6e
topology: v6e:2x2x1
jax: 0.10.0
libtpu: 0.0.40
codegen_flags: <defaults>
</compile_context>

<pallas_src>
import functools

import jax
import jax.numpy as jnp
from jax.experimental import pallas as pl
from jax.experimental.pallas import tpu as pltpu

HIDDEN = 64                 # stand-in for p.hidden_dims (2*HIDDEN must be a multiple of 128 lanes -> 128)
N_STATES = 42 * 3           # 126
N_LEGS = 6 * 2              # 12
N_ACT = 18
IN_DIM = N_STATES + N_LEGS + N_ACT  # 156
BLOCK_B = 512               # batch rows per grid step (fits easily in 32 MiB scoped VMEM on all gens)


def _round_up(x, m):
    return ((x + m - 1) // m) * m


# ----------------------------------------------------------------------------
# Pallas kernel: fused twin-head 3-layer MLP on one batch tile.
# ----------------------------------------------------------------------------
def qnetwork_kernel(
    s_ref, l_ref, a_ref,                 # (TB,126) (TB,12) (TB,18)
    w1s_ref, w1l_ref, w1a_ref, b1_ref,   # (126,128) (12,128) (18,128) (1,128)
    w2_ref, b2_ref,                      # (128,128) (1,128)
    w3_ref, b3_ref,                      # (128,2)   (1,2)
    q_ref,                               # (TB, 2)  -> [:,0]=Q1, [:,1]=Q2
):
    # Layer 1: split-K matmul replaces the wrapper concat (same products,
    # summed on-chip).
    h = (
        jnp.dot(s_ref[...], w1s_ref[...], preferred_element_type=jnp.float32)
        + jnp.dot(l_ref[...], w1l_ref[...], preferred_element_type=jnp.float32)
        + jnp.dot(a_ref[...], w1a_ref[...], preferred_element_type=jnp.float32)
        + b1_ref[...]
    )
    h = jnp.maximum(h, 0.0)

    # Layer 2: block-diagonal fused weight keeps the two heads independent.
    h = jnp.dot(h, w2_ref[...], preferred_element_type=jnp.float32) + b2_ref[...]
    h = jnp.maximum(h, 0.0)

    # Layer 3: fused (128, 2) output head -> single lane-packed store.
    q_ref[...] = jnp.dot(h, w3_ref[...], preferred_element_type=jnp.float32) + b3_ref[...]


# ----------------------------------------------------------------------------
# Wrapper: reshape glue in plain JAX, pipelined batch grid in the kernel.
# ----------------------------------------------------------------------------
@jax.jit
def qnetwork_forward(leg_starts, states, actions, params):
    B = states.shape[0]
    s = states.reshape(B, -1).astype(jnp.float32)       # (B, 126)
    l = leg_starts.reshape(B, -1).astype(jnp.float32)   # (B, 12)
    a = actions.astype(jnp.float32)                     # (B, 18)

    # Batch tiling: TB rows per grid step, pad B up so every block is full.
    TB = min(BLOCK_B, _round_up(B, 8))
    B_pad = _round_up(B, TB)
    if B_pad != B:
        pad = ((0, B_pad - B), (0, 0))
        s = jnp.pad(s, pad)
        l = jnp.pad(l, pad)
        a = jnp.pad(a, pad)

    grid = (B_pad // TB,)

    def data_spec(feat):
        return pl.BlockSpec((TB, feat), lambda i: (i, 0))

    def const_spec(shape):
        # Same block index every grid step -> weight stays VMEM-resident.
        return pl.BlockSpec(shape, lambda i: (0, 0))

    H2 = 2 * HIDDEN  # 128

    q = pl.pallas_call(
        qnetwork_kernel,
        out_shape=jax.ShapeDtypeStruct((B_pad, 2), jnp.float32),
        grid=grid,
        in_specs=[
            data_spec(N_STATES), data_spec(N_LEGS), data_spec(N_ACT),
            const_spec((N_STATES, H2)), const_spec((N_LEGS, H2)),
            const_spec((N_ACT, H2)), const_spec((1, H2)),
            const_spec((H2, H2)), const_spec((1, H2)),
            const_spec((H2, 2)), const_spec((1, 2)),
        ],
        out_specs=pl.BlockSpec((TB, 2), lambda i: (i, 0)),
        compiler_params=pltpu.CompilerParams(
            dimension_semantics=("parallel",),       # shards batch across v7x's 2 TCs
            vmem_limit_bytes=32 * 1024 * 1024,
        ),
    )(
        s, l, a,
        params["w1s"], params["w1l"], params["w1a"], params["b1"],
        params["w2"], params["b2"], params["w3"], params["b3"],
    )

    q = q[:B]
    return q[:, 0:1], q[:, 1:2]


# ----------------------------------------------------------------------------
# Parameter init (xavier_uniform_ weights, zero biases — torch semantics),
# then packing into the fused/lane-dense layout used by the kernel.
# ----------------------------------------------------------------------------
def xavier_uniform(key, fan_in, fan_out, gain=1.0):
    bound = gain * jnp.sqrt(6.0 / (fan_in + fan_out))
    return jax.random.uniform(
        key, (fan_in, fan_out), dtype=jnp.float32, minval=-bound, maxval=bound
    )


def init_raw_params(key, hidden=HIDDEN):
    keys = jax.random.split(key, 6)
    return {
        # head 1 (fc1)
        "w1a": xavier_uniform(keys[0], IN_DIM, hidden),
        "b1a": jnp.zeros((1, hidden), jnp.float32),
        "w2a": xavier_uniform(keys[1], hidden, hidden),
        "b2a": jnp.zeros((1, hidden), jnp.float32),
        "w3a": xavier_uniform(keys[2], hidden, 1),
        "b3a": jnp.zeros((1, 1), jnp.float32),
        # head 2 (fc2)
        "w1b": xavier_uniform(keys[3], IN_DIM, hidden),
        "b1b": jnp.zeros((1, hidden), jnp.float32),
        "w2b": xavier_uniform(keys[4], hidden, hidden),
        "b2b": jnp.zeros((1, hidden), jnp.float32),
        "w3b": xavier_uniform(keys[5], hidden, 1),
        "b3b": jnp.zeros((1, 1), jnp.float32),
    }


def pack_params(raw, hidden=HIDDEN):
    h2 = 2 * hidden
    # Layer 1: concat heads along out dim, then split rows for the no-concat input path.
    w1 = jnp.concatenate([raw["w1a"], raw["w1b"]], axis=1)          # (156, 128)
    b1 = jnp.concatenate([raw["b1a"], raw["b1b"]], axis=1)          # (1, 128)
    # Layer 2: block-diagonal (off-diagonal blocks exactly zero -> no head cross-talk).
    w2 = jnp.zeros((h2, h2), jnp.float32)
    w2 = w2.at[:hidden, :hidden].set(raw["w2a"]).at[hidden:, hidden:].set(raw["w2b"])
    b2 = jnp.concatenate([raw["b2a"], raw["b2b"]], axis=1)          # (1, 128)
    # Layer 3: block-diagonal into a single (128, 2) head -> lane-packed (B, 2) output.
    w3 = jnp.zeros((h2, 2), jnp.float32)
    w3 = w3.at[:hidden, 0:1].set(raw["w3a"]).at[hidden:, 1:2].set(raw["w3b"])
    b3 = jnp.concatenate([raw["b3a"], raw["b3b"]], axis=1)          # (1, 2)
    return {
        "w1s": w1[:N_STATES],
        "w1l": w1[N_STATES:N_STATES + N_LEGS],
        "w1a": w1[N_STATES + N_LEGS:],
        "b1": b1, "w2": w2, "b2": b2, "w3": w3, "b3": b3,
    }


# Pure-JAX reference (unfused, concat-based) for correctness checking.
def reference_forward(leg_starts, states, actions, raw):
    B = states.shape[0]
    x = jnp.concatenate(
        [states.reshape(B, -1), leg_starts.reshape(B, -1), actions], axis=1
    )

    def head(sfx):
        h = jnp.maximum(x @ raw["w1" + sfx] + raw["b1" + sfx], 0.0)
        h = jnp.maximum(h @ raw["w2" + sfx] + raw["b2" + sfx], 0.0)
        return h @ raw["w3" + sfx] + raw["b3" + sfx]

    return head("a"), head("b")


if __name__ == "__main__":
    key = jax.random.PRNGKey(0)
    kp, k1, k2, k3 = jax.random.split(key, 4)

    raw = init_raw_params(kp)
    params = pack_params(raw)

    # Small test (single grid step, TB = 8 after sublane rounding).
    B = 4
    states = jax.random.normal(k1, (B, 42, 3), dtype=jnp.float32)
    leg_starts = jax.random.normal(k2, (B, 6, 2), dtype=jnp.float32)
    actions = jax.random.normal(k3, (B, 18), dtype=jnp.float32)

    q1, q2 = qnetwork_forward(leg_starts, states, actions, params)
    jax.block_until_ready((q1, q2))
    r1, r2 = reference_forward(leg_starts, states, actions, raw)
    assert q1.shape == (B, 1) and q2.shape == (B, 1)
    assert jnp.allclose(q1, r1, atol=1e-4, rtol=1e-4)
    assert jnp.allclose(q2, r2, atol=1e-4, rtol=1e-4)

    # Larger test: exercises multi-step batch grid + padding path (B=600 -> TB=512, grid=2).
    B = 600
    kk1, kk2, kk3 = jax.random.split(k1, 3)
    states = jax.random.normal(kk1, (B, 42, 3), dtype=jnp.float32)
    leg_starts = jax.random.normal(kk2, (B, 6, 2), dtype=jnp.float32)
    actions = jax.random.normal(kk3, (B, 18), dtype=jnp.float32)

    q1, q2 = qnetwork_forward(leg_starts, states, actions, params)
    jax.block_until_ready((q1, q2))
    r1, r2 = reference_forward(leg_starts, states, actions, raw)
    assert q1.shape == (B, 1) and q2.shape == (B, 1)
    assert jnp.allclose(q1, r1, atol=1e-4, rtol=1e-4)
    assert jnp.allclose(q2, r2, atol=1e-4, rtol=1e-4)

    print("KERNEL_OK")
</pallas_src>

<mosaic_0001>
module attributes {stable_mosaic.version = 11 : i64} {
  func.func @qnetwork_kernel(%arg0: i32, %arg1: memref<8x126xf32, #tpu.memory_space<vmem>>, %arg2: memref<8x12xf32, #tpu.memory_space<vmem>>, %arg3: memref<8x18xf32, #tpu.memory_space<vmem>>, %arg4: memref<126x128xf32, #tpu.memory_space<vmem>>, %arg5: memref<12x128xf32, #tpu.memory_space<vmem>>, %arg6: memref<18x128xf32, #tpu.memory_space<vmem>>, %arg7: memref<1x128xf32, #tpu.memory_space<vmem>>, %arg8: memref<128x128xf32, #tpu.memory_space<vmem>>, %arg9: memref<1x128xf32, #tpu.memory_space<vmem>>, %arg10: memref<128x2xf32, #tpu.memory_space<vmem>>, %arg11: memref<1x2xf32, #tpu.memory_space<vmem>>, %arg12: memref<8x2xf32, #tpu.memory_space<vmem>>) attributes {dimension_semantics = [#tpu.dimension_semantics<parallel>], iteration_bounds = array<i64: 1>, scalar_prefetch = 0 : i64, scratch_operands = 0 : i64, tpu.core_type = #tpu.core_type<tc>, window_params = [{transform_indices = @transform_0, window_bounds = array<i64: 8, 126>}, {transform_indices = @transform_1, window_bounds = array<i64: 8, 12>}, {transform_indices = @transform_2, window_bounds = array<i64: 8, 18>}, {pipeline_mode = #tpu.pipeline_mode<synchronous>, transform_indices = @transform_3, window_bounds = array<i64: 126, 128>}, {pipeline_mode = #tpu.pipeline_mode<synchronous>, transform_indices = @transform_4, window_bounds = array<i64: 12, 128>}, {pipeline_mode = #tpu.pipeline_mode<synchronous>, transform_indices = @transform_5, window_bounds = array<i64: 18, 128>}, {pipeline_mode = #tpu.pipeline_mode<synchronous>, transform_indices = @transform_6, window_bounds = array<i64: 1, 128>}, {pipeline_mode = #tpu.pipeline_mode<synchronous>, transform_indices = @transform_7, window_bounds = array<i64: 128, 128>}, {pipeline_mode = #tpu.pipeline_mode<synchronous>, transform_indices = @transform_8, window_bounds = array<i64: 1, 128>}, {pipeline_mode = #tpu.pipeline_mode<synchronous>, transform_indices = @transform_9, window_bounds = array<i64: 128, 2>}, {pipeline_mode = #tpu.pipeline_mode<synchronous>, transform_indices = @transform_10, window_bounds = array<i64: 1, 2>}, {transform_indices = @transform_11, window_bounds = array<i64: 8, 2>}]} {
    %c0 = arith.constant 0 : index
    %c0_0 = arith.constant 0 : index
    %0 = vector.load %arg1[%c0, %c0_0] : memref<8x126xf32, #tpu.memory_space<vmem>>, vector<8x126xf32>
    %c0_1 = arith.constant 0 : index
    %c0_2 = arith.constant 0 : index
    %1 = vector.load %arg4[%c0_1, %c0_2] : memref<126x128xf32, #tpu.memory_space<vmem>>, vector<126x128xf32>
    %cst = arith.constant dense<0.000000e+00> : vector<8x128xf32>
    %2 = tpu.matmul %0, %1, %cst {dimension_numbers = #tpu.dot_dimension_numbers<[1], [0], [0], [1], [0, 0, 1, 1], [], []>} : vector<8x126xf32>, vector<126x128xf32>, vector<8x128xf32> -> vector<8x128xf32>
    %c0_3 = arith.constant 0 : index
    %c0_4 = arith.constant 0 : index
    %3 = vector.load %arg2[%c0_3, %c0_4] : memref<8x12xf32, #tpu.memory_space<vmem>>, vector<8x12xf32>
    %c0_5 = arith.constant 0 : index
    %c0_6 = arith.constant 0 : index
    %4 = vector.load %arg5[%c0_5, %c0_6] : memref<12x128xf32, #tpu.memory_space<vmem>>, vector<12x128xf32>
    %cst_7 = arith.constant dense<0.000000e+00> : vector<8x128xf32>
    %5 = tpu.matmul %3, %4, %cst_7 {dimension_numbers = #tpu.dot_dimension_numbers<[1], [0], [0], [1], [0, 0, 1, 1], [], []>} : vector<8x12xf32>, vector<12x128xf32>, vector<8x128xf32> -> vector<8x128xf32>
    %6 = arith.addf %2, %5 : vector<8x128xf32>
    %c0_8 = arith.constant 0 : index
    %c0_9 = arith.constant 0 : index
    %7 = vector.load %arg3[%c0_8, %c0_9] : memref<8x18xf32, #tpu.memory_space<vmem>>, vector<8x18xf32>
    %c0_10 = arith.constant 0 : index
    %c0_11 = arith.constant 0 : index
    %8 = vector.load %arg6[%c0_10, %c0_11] : memref<18x128xf32, #tpu.memory_space<vmem>>, vector<18x128xf32>
    %cst_12 = arith.constant dense<0.000000e+00> : vector<8x128xf32>
    %9 = tpu.matmul %7, %8, %cst_12 {dimension_numbers = #tpu.dot_dimension_numbers<[1], [0], [0], [1], [0, 0, 1, 1], [], []>} : vector<8x18xf32>, vector<18x128xf32>, vector<8x128xf32> -> vector<8x128xf32>
    %10 = arith.addf %6, %9 : vector<8x128xf32>
    %c0_13 = arith.constant 0 : index
    %c0_14 = arith.constant 0 : index
    %11 = vector.load %arg7[%c0_13, %c0_14] : memref<1x128xf32, #tpu.memory_space<vmem>>, vector<1x128xf32>
    %12 = vector.broadcast %11 : vector<1x128xf32> to vector<8x128xf32>
    %13 = arith.addf %10, %12 : vector<8x128xf32>
    %cst_15 = arith.constant 0.000000e+00 : f32
    %14 = vector.broadcast %cst_15 : f32 to vector<8x128xf32>
    %15 = arith.maximumf %13, %14 : vector<8x128xf32>
    %c0_16 = arith.constant 0 : index
    %c0_17 = arith.constant 0 : index
    %16 = vector.load %arg8[%c0_16, %c0_17] : memref<128x128xf32, #tpu.memory_space<vmem>>, vector<128x128xf32>
    %cst_18 = arith.constant dense<0.000000e+00> : vector<8x128xf32>
    %17 = tpu.matmul %15, %16, %cst_18 {dimension_numbers = #tpu.dot_dimension_numbers<[1], [0], [0], [1], [0, 0, 1, 1], [], []>} : vector<8x128xf32>, vector<128x128xf32>, vector<8x128xf32> -> vector<8x128xf32>
    %c0_19 = arith.constant 0 : index
    %c0_20 = arith.constant 0 : index
    %18 = vector.load %arg9[%c0_19, %c0_20] : memref<1x128xf32, #tpu.memory_space<vmem>>, vector<1x128xf32>
    %19 = vector.broadcast %18 : vector<1x128xf32> to vector<8x128xf32>
    %20 = arith.addf %17, %19 : vector<8x128xf32>
    %cst_21 = arith.constant 0.000000e+00 : f32
    %21 = vector.broadcast %cst_21 : f32 to vector<8x128xf32>
    %22 = arith.maximumf %20, %21 : vector<8x128xf32>
    %c0_22 = arith.constant 0 : index
    %c0_23 = arith.constant 0 : index
    %23 = vector.load %arg10[%c0_22, %c0_23] : memref<128x2xf32, #tpu.memory_space<vmem>>, vector<128x2xf32>
    %cst_24 = arith.constant dense<0.000000e+00> : vector<8x2xf32>
    %24 = tpu.matmul %22, %23, %cst_24 {dimension_numbers = #tpu.dot_dimension_numbers<[1], [0], [0], [1], [0, 0, 1, 1], [], []>} : vector<8x128xf32>, vector<128x2xf32>, vector<8x2xf32> -> vector<8x2xf32>
    %c0_25 = arith.constant 0 : index
    %c0_26 = arith.constant 0 : index
    %25 = vector.load %arg11[%c0_25, %c0_26] : memref<1x2xf32, #tpu.memory_space<vmem>>, vector<1x2xf32>
    %26 = vector.broadcast %25 : vector<1x2xf32> to vector<8x2xf32>
    %27 = arith.addf %24, %26 : vector<8x2xf32>
    %c0_27 = arith.constant 0 : index
    %c0_28 = arith.constant 0 : index
    %28 = vector.load %arg12[%c0_27, %c0_28] : memref<8x2xf32, #tpu.memory_space<vmem>>, vector<8x2xf32>
    tpu.vector_store %arg12[%c0_27, %c0_28], %27 {strides = array<i32>} : memref<8x2xf32, #tpu.memory_space<vmem>>, vector<8x2xf32>,
    return
  }
  func.func @transform_0(%arg0: i32) -> (i32, i32) {
    %c0_i32 = arith.constant 0 : i32
    %c0_i32_0 = arith.constant 0 : i32
    return %arg0, %c0_i32 : i32, i32
  }
  func.func @transform_1(%arg0: i32) -> (i32, i32) {
    %c0_i32 = arith.constant 0 : i32
    %c0_i32_0 = arith.constant 0 : i32
    return %arg0, %c0_i32 : i32, i32
  }
  func.func @transform_2(%arg0: i32) -> (i32, i32) {
    %c0_i32 = arith.constant 0 : i32
    %c0_i32_0 = arith.constant 0 : i32
    return %arg0, %c0_i32 : i32, i32
  }
  func.func @transform_3(%arg0: i32) -> (i32, i32) {
    %c0_i32 = arith.constant 0 : i32
    %c0_i32_0 = arith.constant 0 : i32
    %c0_i32_1 = arith.constant 0 : i32
    return %c0_i32, %c0_i32_0 : i32, i32
  }
  func.func @transform_4(%arg0: i32) -> (i32, i32) {
    %c0_i32 = arith.constant 0 : i32
    %c0_i32_0 = arith.constant 0 : i32
    %c0_i32_1 = arith.constant 0 : i32
    return %c0_i32, %c0_i32_0 : i32, i32
  }
  func.func @transform_5(%arg0: i32) -> (i32, i32) {
    %c0_i32 = arith.constant 0 : i32
    %c0_i32_0 = arith.constant 0 : i32
    %c0_i32_1 = arith.constant 0 : i32
    return %c0_i32, %c0_i32_0 : i32, i32
  }
  func.func @transform_6(%arg0: i32) -> (i32, i32) {
    %c0_i32 = arith.constant 0 : i32
    %c0_i32_0 = arith.constant 0 : i32
    %c0_i32_1 = arith.constant 0 : i32
    return %c0_i32, %c0_i32_0 : i32, i32
  }
  func.func @transform_7(%arg0: i32) -> (i32, i32) {
    %c0_i32 = arith.constant 0 : i32
    %c0_i32_0 = arith.constant 0 : i32
    %c0_i32_1 = arith.constant 0 : i32
    return %c0_i32, %c0_i32_0 : i32, i32
  }
  func.func @transform_8(%arg0: i32) -> (i32, i32) {
    %c0_i32 = arith.constant 0 : i32
    %c0_i32_0 = arith.constant 0 : i32
    %c0_i32_1 = arith.constant 0 : i32
    return %c0_i32, %c0_i32_0 : i32, i32
  }
  func.func @transform_9(%arg0: i32) -> (i32, i32) {
    %c0_i32 = arith.constant 0 : i32
    %c0_i32_0 = arith.constant 0 : i32
    %c0_i32_1 = arith.constant 0 : i32
    return %c0_i32, %c0_i32_0 : i32, i32
  }
  func.func @transform_10(%arg0: i32) -> (i32, i32) {
    %c0_i32 = arith.constant 0 : i32
    %c0_i32_0 = arith.constant 0 : i32
    %c0_i32_1 = arith.constant 0 : i32
    return %c0_i32, %c0_i32_0 : i32, i32
  }
  func.func @transform_11(%arg0: i32) -> (i32, i32) {
    %c0_i32 = arith.constant 0 : i32
    %c0_i32_0 = arith.constant 0 : i32
    return %arg0, %c0_i32 : i32, i32
  }
}

</mosaic_0001>

<llo_original>
// kernel: qnetwork_forward.1
$region0: #{qnetwork_forward.1}
  #allocation0 [shape = 'u32[]', space=smem, size = 0x4, offset = 0x4, fixed_abs, tag = 'smem constant byte address 0x4 - core index']
  #allocation1 [shape = 'u32[144,128]{1,0:T(1,128)}', space=vmem, size = 0x12000, scoped, tag = 'internal scratch']
  %s0 = inlined_call_operand.vmem [shape: f32[8,126], index: 0, kind: input, shape index: {}]
  %s1 = inlined_call_operand.vmem [shape: f32[8,12], index: 1, kind: input, shape index: {}]
  %s2 = inlined_call_operand.vmem [shape: f32[8,18], index: 2, kind: input, shape index: {}]
  %s3 = inlined_call_operand.vmem [shape: f32[126,128], index: 3, kind: input, shape index: {}]
  %s4 = inlined_call_operand.vmem [shape: f32[12,128], index: 4, kind: input, shape index: {}]
  %s5 = inlined_call_operand.vmem [shape: f32[18,128], index: 5, kind: input, shape index: {}]
  %s6 = inlined_call_operand.vmem [shape: f32[1,128], index: 6, kind: input, shape index: {}]
  %s7 = inlined_call_operand.vmem [shape: f32[128,128], index: 7, kind: input, shape index: {}]
  %s8 = inlined_call_operand.vmem [shape: f32[1,128], index: 8, kind: input, shape index: {}]
  %s9 = inlined_call_operand.vmem [shape: f32[128,2], index: 9, kind: input, shape index: {}]
  %s10 = inlined_call_operand.vmem [shape: f32[1,2], index: 10, kind: input, shape index: {}]
  %s11 = inlined_call_operand.vmem [shape: f32[8,2], index: 11, kind: output, shape index: {}]
  %s12 = sld [smem:[#allocation0]]
  $region54: #{qnetwork_forward.1} parent=0
    _
  %s14 = ssub.s32 1, %s12
  %s15 = scalar_select 0, %s14, %s12
  // Predicated region
  $region2: #{qnetwork_forward.1} parent=0 // pred_check
    _
  $region3: #{qnetwork_forward.1} parent=0 // pred_check_branch
    %17 = sbr.rel (0) target = $region5
  $region4: #{qnetwork_forward.1} parent=0 // pred_region
    _
  $region5: #{qnetwork_forward.1} parent=0 // pred_fallthru
    _
  // Predicated region
  $region6: #{qnetwork_forward.1} parent=0 // pred_check
    _
  $region7: #{qnetwork_forward.1} parent=0 // pred_check_branch
    %19 = sbr.rel (0) target = $region9
  $region8: #{qnetwork_forward.1} parent=0 // pred_region
    _
  $region9: #{qnetwork_forward.1} parent=0 // pred_fallthru
    _
  // Predicated region
  $region10: #{qnetwork_forward.1} parent=0 // pred_check
    _
  $region11: #{qnetwork_forward.1} parent=0 // pred_check_branch
    %21 = sbr.rel (0) target = $region13
  $region12: #{qnetwork_forward.1} parent=0 // pred_region
    _
  $region13: #{qnetwork_forward.1} parent=0 // pred_fallthru
    _
  // Predicated region
  $region14: #{qnetwork_forward.1} parent=0 // pred_check
    _
  $region15: #{qnetwork_forward.1} parent=0 // pred_check_branch
    %23 = sbr.rel (0) target = $region17
  $region16: #{qnetwork_forward.1} parent=0 // pred_region
    _
  $region17: #{qnetwork_forward.1} parent=0 // pred_fallthru
    _
  // Predicated region
  $region18: #{qnetwork_forward.1} parent=0 // pred_check
    _
  $region19: #{qnetwork_forward.1} parent=0 // pred_check_branch
    %25 = sbr.rel (0) target = $region21
  $region20: #{qnetwork_forward.1} parent=0 // pred_region
    _
  $region21: #{qnetwork_forward.1} parent=0 // pred_fallthru
    _
  // Predicated region
  $region22: #{qnetwork_forward.1} parent=0 // pred_check
    _
  $region23: #{qnetwork_forward.1} parent=0 // pred_check_branch
    %27 = sbr.rel (0) target = $region25
  $region24: #{qnetwork_forward.1} parent=0 // pred_region
    _
  $region25: #{qnetwork_forward.1} parent=0 // pred_fallthru
    _
  // Predicated region
  $region26: #{qnetwork_forward.1} parent=0 // pred_check
    _
  $region27: #{qnetwork_forward.1} parent=0 // pred_check_branch
    %29 = sbr.rel (0) target = $region29
  $region28: #{qnetwork_forward.1} parent=0 // pred_region
    _
  $region29: #{qnetwork_forward.1} parent=0 // pred_fallthru
    _
  // Predicated region
  $region30: #{qnetwork_forward.1} parent=0 // pred_check
    _
  $region31: #{qnetwork_forward.1} parent=0 // pred_check_branch
    %31 = sbr.rel (0) target = $region33
  $region32: #{qnetwork_forward.1} parent=0 // pred_region
    _
  $region33: #{qnetwork_forward.1} parent=0 // pred_fallthru
    _
  // Predicated region
  $region34: #{qnetwork_forward.1} parent=0 // pred_check
    _
  $region35: #{qnetwork_forward.1} parent=0 // pred_check_branch
    %33 = sbr.rel (0) target = $region37
  $region36: #{qnetwork_forward.1} parent=0 // pred_region
    _
  $region37: #{qnetwork_forward.1} parent=0 // pred_fallthru
    _
  // Predicated region
  $region38: #{qnetwork_forward.1} parent=0 // pred_check
    _
  $region39: #{qnetwork_forward.1} parent=0 // pred_check_branch
    %35 = sbr.rel (0) target = $region41
  $region40: #{qnetwork_forward.1} parent=0 // pred_region
    _
  $region41: #{qnetwork_forward.1} parent=0 // pred_fallthru
    _
  // Predicated region
  $region42: #{qnetwork_forward.1} parent=0 // pred_check
    _
  $region43: #{qnetwork_forward.1} parent=0 // pred_check_branch
    %37 = sbr.rel (0) target = $region45
  $region44: #{qnetwork_forward.1} parent=0 // pred_region
    _
  $region45: #{qnetwork_forward.1} parent=0 // pred_fallthru
    _
  %v38 = vld [vmem:[%s0] sm:$0xff]
  %v39 = vld [vmem:[%s3] sm:$0xff]
  %v40 = vld [vmem:[%s3 + $0x8] sm:$0xff]
  %v41 = vld [vmem:[%s3 + $0x10] sm:$0xff]
  %v42 = vld [vmem:[%s3 + $0x18] sm:$0xff]
  %v43 = vld [vmem:[%s3 + $0x20] sm:$0xff]
  %v44 = vld [vmem:[%s3 + $0x28] sm:$0xff]
  %v45 = vld [vmem:[%s3 + $0x30] sm:$0xff]
  %v46 = vld [vmem:[%s3 + $0x38] sm:$0xff]
  %v47 = vld [vmem:[%s3 + $0x40] sm:$0xff]
  %v48 = vld [vmem:[%s3 + $0x48] sm:$0xff]
  %v49 = vld [vmem:[%s3 + $0x50] sm:$0xff]
  %v50 = vld [vmem:[%s3 + $0x58] sm:$0xff]
  %v51 = vld [vmem:[%s3 + $0x60] sm:$0xff]
  %v52 = vld [vmem:[%s3 + $0x68] sm:$0xff]
  %v53 = vld [vmem:[%s3 + $0x70] sm:$0xff]
  %v54 = vld [vmem:[%s3 + $0x78] sm:$0x3f]
  %v55 = vld [vmem:[%s1] sm:$0xff]
  %v56 = vld [vmem:[%s4] sm:$0xff]
  %v57 = vld [vmem:[%s4 + $0x8] sm:$0xf]
  %vm58 = vcmask 97280
  %v60 = vsel %vm58, %v55, 0
  %vm62 = vcmask 1043456
  %v64 = vsel %vm62, %v57, 0
  %66 = vmatprep.subr.mxu0 0.0
  %67 = vmatpush1.msra.mxu0 0.0
  %68 = vmatprep.subr.mxu0 0.0
  %69 = vmatpush1.msra.mxu0 0.0
  %70 = vmatprep.subr.mxu0 0.0
  %71 = vmatpush1.msra.mxu0 0.0
  %72 = vmatprep.subr.mxu0 0.0
  %73 = vmatpush1.msra.mxu0 0.0
  %74 = vmatprep.subr.mxu0 0.0
  %75 = vmatpush1.msra.mxu0 0.0
  %76 = vmatprep.subr.mxu0 0.0
  %77 = vmatpush1.msra.mxu0 0.0
  %78 = vmatprep.subr.mxu0 0.0
  %79 = vmatpush1.msra.mxu0 0.0
  %80 = vmatprep.subr.mxu0 0.0
  %81 = vmatpush1.msra.mxu0 0.0
  %82 = vmatprep.subr.mxu0 0.0
  %83 = vmatpush1.msra.mxu0 0.0
  %84 = vmatprep.subr.mxu0 0.0
  %85 = vmatpush1.msra.mxu0 0.0
  %86 = vmatprep.subr.mxu0 0.0
  %87 = vmatpush1.msra.mxu0 0.0
  %88 = vmatprep.subr.mxu0 0.0
  %89 = vmatpush1.msra.mxu0 0.0
  %90 = vmatprep.subr.mxu0 0.0
  %91 = vmatpush1.msra.mxu0 0.0
  %92 = vmatprep.subr.mxu0 0.0
  %93 = vmatpush1.msra.mxu0 0.0
  %94 = vmatprep.subr.mxu0 0.0
  %95 = vmatpush1.msra.mxu0 %v64
  %96 = vmatprep.subr.mxu0 0.0
  %97 = vmatpush1.msra.mxu0 %v56
  %98 = vmatprep.subr.mxu0 0.0
  %99 = vmatpush2.msra.mxu0 0.0
  %100 = vmatprep.subr.mxu0 0.0
  %101 = vmatpush2.msra.mxu0 0.0
  %102 = vmatprep.subr.mxu0 0.0
  %103 = vmatpush2.msra.mxu0 0.0
  %104 = vmatprep.subr.mxu0 0.0
  %105 = vmatpush2.msra.mxu0 0.0
  %106 = vmatprep.subr.mxu0 0.0
  %107 = vmatpush2.msra.mxu0 0.0
  %108 = vmatprep.subr.mxu0 0.0
  %109 = vmatpush2.msra.mxu0 0.0
  %110 = vmatprep.subr.mxu0 0.0
  %111 = vmatpush2.msra.mxu0 0.0
  %112 = vmatprep.subr.mxu0 0.0
  %113 = vmatpush2.msra.mxu0 0.0
  %114 = vmatprep.subr.mxu0 0.0
  %115 = vmatpush2.msra.mxu0 0.0
  %116 = vmatprep.subr.mxu0 0.0
  %117 = vmatpush2.msra.mxu0 0.0
  %118 = vmatprep.subr.mxu0 0.0
  %119 = vmatpush2.msra.mxu0 0.0
  %120 = vmatprep.subr.mxu0 0.0
  %121 = vmatpush2.msra.mxu0 0.0
  %122 = vmatprep.subr.mxu0 0.0
  %123 = vmatpush2.msra.mxu0 0.0
  %124 = vmatprep.subr.mxu0 0.0
  %125 = vmatpush2.msra.mxu0 0.0
  %126 = vmatprep.subr.mxu0 0.0
  %127 = vmatpush2.msra.mxu0 0.0
  %128 = vmatprep.subr.mxu0 0.0
  %129 = vmatpush2.msra.mxu0 0.0
  %130 = vmatprep.mubr.f32.mxu0 0.0
  %131 = vmatmul.mubr.f32.gmra.mxu0 %v60
  %v132 = vpop.f32.mrf.mxu0
  %v133 = vadd.f32 0.0, %v132
  %v134 = vpop.f32.mrf.mxu0
  %135 = vdwg.mxu0
  %vm136 = vcmask 1031168
  %v138 = vsel %vm136, %v38, 0
  %vm140 = vcmask 1045504
  %v142 = vsel %vm140, %v54, 0
  %144 = vmatprep.subr.mxu0 0.0
  %145 = vmatpush1.msra.mxu0 %v142
  %146 = vmatprep.subr.mxu0 0.0
  %147 = vmatpush1.msra.mxu0 %v53
  %148 = vmatprep.subr.mxu0 0.0
  %149 = vmatpush1.msra.mxu0 %v52
  %150 = vmatprep.subr.mxu0 0.0
  %151 = vmatpush1.msra.mxu0 %v51
  %152 = vmatprep.subr.mxu0 0.0
  %153 = vmatpush1.msra.mxu0 %v50
  %154 = vmatprep.subr.mxu0 0.0
  %155 = vmatpush1.msra.mxu0 %v49
  %156 = vmatprep.subr.mxu0 0.0
  %157 = vmatpush1.msra.mxu0 %v48
  %158 = vmatprep.subr.mxu0 0.0
  %159 = vmatpush1.msra.mxu0 %v47
  %160 = vmatprep.subr.mxu0 0.0
  %161 = vmatpush1.msra.mxu0 %v46
  %162 = vmatprep.subr.mxu0 0.0
  %163 = vmatpush1.msra.mxu0 %v45
  %164 = vmatprep.subr.mxu0 0.0
  %165 = vmatpush1.msra.mxu0 %v44
  %166 = vmatprep.subr.mxu0 0.0
  %167 = vmatpush1.msra.mxu0 %v43
  %168 = vmatprep.subr.mxu0 0.0
  %169 = vmatpush1.msra.mxu0 %v42
  %170 = vmatprep.subr.mxu0 0.0
  %171 = vmatpush1.msra.mxu0 %v41
  %172 = vmatprep.subr.mxu0 0.0
  %173 = vmatpush1.msra.mxu0 %v40
  %174 = vmatprep.subr.mxu0 0.0
  %175 = vmatpush1.msra.mxu0 %v39
  %176 = vmatprep.subr.mxu0 0.0
  %177 = vmatpush2.msra.mxu0 0.0
  %178 = vmatprep.subr.mxu0 0.0
  %179 = vmatpush2.msra.mxu0 0.0
  %180 = vmatprep.subr.mxu0 0.0
  %181 = vmatpush2.msra.mxu0 0.0
  %182 = vmatprep.subr.mxu0 0.0
  %183 = vmatpush2.msra.mxu0 0.0
  %184 = vmatprep.subr.mxu0 0.0
  %185 = vmatpush2.msra.mxu0 0.0
  %186 = vmatprep.subr.mxu0 0.0
  %187 = vmatpush2.msra.mxu0 0.0
  %188 = vmatprep.subr.mxu0 0.0
  %189 = vmatpush2.msra.mxu0 0.0
  %190 = vmatprep.subr.mxu0 0.0
  %191 = vmatpush2.msra.mxu0 0.0
  %192 = vmatprep.subr.mxu0 0.0
  %193 = vmatpush2.msra.mxu0 0.0
  %194 = vmatprep.subr.mxu0 0.0
  %195 = vmatpush2.msra.mxu0 0.0
  %196 = vmatprep.subr.mxu0 0.0
  %197 = vmatpush2.msra.mxu0 0.0
  %198 = vmatprep.subr.mxu0 0.0
  %199 = vmatpush2.msra.mxu0 0.0
  %200 = vmatprep.subr.mxu0 0.0
  %201 = vmatpush2.msra.mxu0 0.0
  %202 = vmatprep.subr.mxu0 0.0
  %203 = vmatpush2.msra.mxu0 0.0
  %204 = vmatprep.subr.mxu0 0.0
  %205 = vmatpush2.msra.mxu0 0.0
  %206 = vmatprep.subr.mxu0 0.0
  %207 = vmatpush2.msra.mxu0 0.0
  %208 = vmatprep.mubr.f32.mxu0 0.0
  %209 = vmatmul.mubr.f32.gmra.mxu0 %v138
  %v210 = vpop.f32.mrf.mxu0
  %v211 = vadd.f32 %v133, %v210
  %v212 = vpop.f32.mrf.mxu0
  %213 = vdwg.mxu0
  %v214 = vld [vmem:[%s2] sm:$0xff]
  %v215 = vld [vmem:[%s5] sm:$0xff]
  %v216 = vld [vmem:[%s5 + $0x8] sm:$0xff]
  %v217 = vld [vmem:[%s5 + $0x10] sm:$0x3]
  %vm218 = vcmask 146432
  %v220 = vsel %vm218, %v214, 0
  %vm222 = vcmask 1041408
  %v224 = vsel %vm222, %v217, 0
  %226 = vmatprep.subr.mxu0 0.0
  %227 = vmatpush1.msra.mxu0 0.0
  %228 = vmatprep.subr.mxu0 0.0
  %229 = vmatpush1.msra.mxu0 0.0
  %230 = vmatprep.subr.mxu0 0.0
  %231 = vmatpush1.msra.mxu0 0.0
  %232 = vmatprep.subr.mxu0 0.0
  %233 = vmatpush1.msra.mxu0 0.0
  %234 = vmatprep.subr.mxu0 0.0
  %235 = vmatpush1.msra.mxu0 0.0
  %236 = vmatprep.subr.mxu0 0.0
  %237 = vmatpush1.msra.mxu0 0.0
  %238 = vmatprep.subr.mxu0 0.0
  %239 = vmatpush1.msra.mxu0 0.0
  %240 = vmatprep.subr.mxu0 0.0
  %241 = vmatpush1.msra.mxu0 0.0
  %242 = vmatprep.subr.mxu0 0.0
  %243 = vmatpush1.msra.mxu0 0.0
  %244 = vmatprep.subr.mxu0 0.0
  %245 = vmatpush1.msra.mxu0 0.0
  %246 = vmatprep.subr.mxu0 0.0
  %247 = vmatpush1.msra.mxu0 0.0
  %248 = vmatprep.subr.mxu0 0.0
  %249 = vmatpush1.msra.mxu0 0.0
  %250 = vmatprep.subr.mxu0 0.0
  %251 = vmatpush1.msra.mxu0 0.0
  %252 = vmatprep.subr.mxu0 0.0
  %253 = vmatpush1.msra.mxu0 %v224
  %254 = vmatprep.subr.mxu0 0.0
  %255 = vmatpush1.msra.mxu0 %v216
  %256 = vmatprep.subr.mxu0 0.0
  %257 = vmatpush1.msra.mxu0 %v215
  %258 = vmatprep.subr.mxu0 0.0
  %259 = vmatpush2.msra.mxu0 0.0
  %260 = vmatprep.subr.mxu0 0.0
  %261 = vmatpush2.msra.mxu0 0.0
  %262 = vmatprep.subr.mxu0 0.0
  %263 = vmatpush2.msra.mxu0 0.0
  %264 = vmatprep.subr.mxu0 0.0
  %265 = vmatpush2.msra.mxu0 0.0
  %266 = vmatprep.subr.mxu0 0.0
  %267 = vmatpush2.msra.mxu0 0.0
  %268 = vmatprep.subr.mxu0 0.0
  %269 = vmatpush2.msra.mxu0 0.0
  %270 = vmatprep.subr.mxu0 0.0
  %271 = vmatpush2.msra.mxu0 0.0
  %272 = vmatprep.subr.mxu0 0.0
  %273 = vmatpush2.msra.mxu0 0.0
  %274 = vmatprep.subr.mxu0 0.0
  %275 = vmatpush2.msra.mxu0 0.0
  %276 = vmatprep.subr.mxu0 0.0
  %277 = vmatpush2.msra.mxu0 0.0
  %278 = vmatprep.subr.mxu0 0.0
  %279 = vmatpush2.msra.mxu0 0.0
  %280 = vmatprep.subr.mxu0 0.0
  %281 = vmatpush2.msra.mxu0 0.0
  %282 = vmatprep.subr.mxu0 0.0
  %283 = vmatpush2.msra.mxu0 0.0
  %284 = vmatprep.subr.mxu0 0.0
  %285 = vmatpush2.msra.mxu0 0.0
  %286 = vmatprep.subr.mxu0 0.0
  %287 = vmatpush2.msra.mxu0 0.0
  %288 = vmatprep.subr.mxu0 0.0
  %289 = vmatpush2.msra.mxu0 0.0
  %290 = vmatprep.mubr.f32.mxu0 0.0
  %291 = vmatmul.mubr.f32.gmra.mxu0 %v220
  %v292 = vpop.f32.mrf.mxu0
  %v293 = vadd.f32 0.0, %v292
  %v294 = vpop.f32.mrf.mxu0
  %295 = vdwg.mxu0
  %v296 = vadd.f32 %v211, %v293
  %v297 = vld [vmem:[%s6] sm:$0x1]
  %v299 = vlaneseq
  %v300 = vshrl.u32 %v299, 7
  %v301 = vsub.s32 0, %v300
  %v302 = vrot.slane %v297, %v301
  %v304 = vadd.f32 %v296, %v302
  %v305 = vmax.f32 %v304, 0.0
  %v306 = vld [vmem:[%s7] sm:$0xff]
  %v307 = vld [vmem:[%s7 + $0x8] sm:$0xff]
  %v308 = vld [vmem:[%s7 + $0x10] sm:$0xff]
  %v309 = vld [vmem:[%s7 + $0x18] sm:$0xff]
  %v310 = vld [vmem:[%s7 + $0x20] sm:$0xff]
  %v311 = vld [vmem:[%s7 + $0x28] sm:$0xff]
  %v312 = vld [vmem:[%s7 + $0x30] sm:$0xff]
  %v313 = vld [vmem:[%s7 + $0x38] sm:$0xff]
  %v314 = vld [vmem:[%s7 + $0x40] sm:$0xff]
  %v315 = vld [vmem:[%s7 + $0x48] sm:$0xff]
  %v316 = vld [vmem:[%s7 + $0x50] sm:$0xff]
  %v317 = vld [vmem:[%s7 + $0x58] sm:$0xff]
  %v318 = vld [vmem:[%s7 + $0x60] sm:$0xff]
  %v319 = vld [vmem:[%s7 + $0x68] sm:$0xff]
  %v320 = vld [vmem:[%s7 + $0x70] sm:$0xff]
  %v321 = vld [vmem:[%s7 + $0x78] sm:$0xff]
  %v322 = vld [vmem:[%s8] sm:$0x1]
  %v324 = vlaneseq
  %v325 = vshrl.u32 %v324, 7
  %v326 = vsub.s32 0, %v325
  %v327 = vrot.slane %v322, %v326
  %329 = vmatprep.subr.mxu0 0.0
  %330 = vmatpush1.msra.mxu0 %v321
  %331 = vmatprep.subr.mxu0 0.0
  %332 = vmatpush1.msra.mxu0 %v320
  %333 = vmatprep.subr.mxu0 0.0
  %334 = vmatpush1.msra.mxu0 %v319
  %335 = vmatprep.subr.mxu0 0.0
  %336 = vmatpush1.msra.mxu0 %v318
  %337 = vmatprep.subr.mxu0 0.0
  %338 = vmatpush1.msra.mxu0 %v317
  %339 = vmatprep.subr.mxu0 0.0
  %340 = vmatpush1.msra.mxu0 %v316
  %341 = vmatprep.subr.mxu0 0.0
  %342 = vmatpush1.msra.mxu0 %v315
  %343 = vmatprep.subr.mxu0 0.0
  %344 = vmatpush1.msra.mxu0 %v314
  %345 = vmatprep.subr.mxu0 0.0
  %346 = vmatpush1.msra.mxu0 %v313
  %347 = vmatprep.subr.mxu0 0.0
  %348 = vmatpush1.msra.mxu0 %v312
  %349 = vmatprep.subr.mxu0 0.0
  %350 = vmatpush1.msra.mxu0 %v311
  %351 = vmatprep.subr.mxu0 0.0
  %352 = vmatpush1.msra.mxu0 %v310
  %353 = vmatprep.subr.mxu0 0.0
  %354 = vmatpush1.msra.mxu0 %v309
  %355 = vmatprep.subr.mxu0 0.0
  %356 = vmatpush1.msra.mxu0 %v308
  %357 = vmatprep.subr.mxu0 0.0
  %358 = vmatpush1.msra.mxu0 %v307
  %359 = vmatprep.subr.mxu0 0.0
  %360 = vmatpush1.msra.mxu0 %v306
  %361 = vmatprep.subr.mxu0 0.0
  %362 = vmatpush2.msra.mxu0 0.0
  %363 = vmatprep.subr.mxu0 0.0
  %364 = vmatpush2.msra.mxu0 0.0
  %365 = vmatprep.subr.mxu0 0.0
  %366 = vmatpush2.msra.mxu0 0.0
  %367 = vmatprep.subr.mxu0 0.0
  %368 = vmatpush2.msra.mxu0 0.0
  %369 = vmatprep.subr.mxu0 0.0
  %370 = vmatpush2.msra.mxu0 0.0
  %371 = vmatprep.subr.mxu0 0.0
  %372 = vmatpush2.msra.mxu0 0.0
  %373 = vmatprep.subr.mxu0 0.0
  %374 = vmatpush2.msra.mxu0 0.0
  %375 = vmatprep.subr.mxu0 0.0
  %376 = vmatpush2.msra.mxu0 0.0
  %377 = vmatprep.subr.mxu0 0.0
  %378 = vmatpush2.msra.mxu0 0.0
  %379 = vmatprep.subr.mxu0 0.0
  %380 = vmatpush2.msra.mxu0 0.0
  %381 = vmatprep.subr.mxu0 0.0
  %382 = vmatpush2.msra.mxu0 0.0
  %383 = vmatprep.subr.mxu0 0.0
  %384 = vmatpush2.msra.mxu0 0.0
  %385 = vmatprep.subr.mxu0 0.0
  %386 = vmatpush2.msra.mxu0 0.0
  %387 = vmatprep.subr.mxu0 0.0
  %388 = vmatpush2.msra.mxu0 0.0
  %389 = vmatprep.subr.mxu0 0.0
  %390 = vmatpush2.msra.mxu0 0.0
  %391 = vmatprep.subr.mxu0 0.0
  %392 = vmatpush2.msra.mxu0 0.0
  %393 = vmatprep.mubr.f32.mxu0 0.0
  %394 = vmatmul.mubr.f32.gmra.mxu0 %v305
  %v395 = vpop.f32.mrf.mxu0
  %v396 = vadd.f32 %v327, %v395
  %v397 = vpop.f32.mrf.mxu0
  %398 = vdwg.mxu0
  %v399 = vmax.f32 %v396, 0.0
  %v400 = vld [vmem:[%s9] sm:$0xff]
  %v401 = vld [vmem:[%s9 + $0x8] sm:$0xff]
  %v402 = vld [vmem:[%s9 + $0x10] sm:$0xff]
  %v403 = vld [vmem:[%s9 + $0x18] sm:$0xff]
  %v404 = vld [vmem:[%s9 + $0x20] sm:$0xff]
  %v405 = vld [vmem:[%s9 + $0x28] sm:$0xff]
  %v406 = vld [vmem:[%s9 + $0x30] sm:$0xff]
  %v407 = vld [vmem:[%s9 + $0x38] sm:$0xff]
  %v408 = vld [vmem:[%s9 + $0x40] sm:$0xff]
  %v409 = vld [vmem:[%s9 + $0x48] sm:$0xff]
  %v410 = vld [vmem:[%s9 + $0x50] sm:$0xff]
  %v411 = vld [vmem:[%s9 + $0x58] sm:$0xff]
  %v412 = vld [vmem:[%s9 + $0x60] sm:$0xff]
  %v413 = vld [vmem:[%s9 + $0x68] sm:$0xff]
  %v414 = vld [vmem:[%s9 + $0x70] sm:$0xff]
  %v415 = vld [vmem:[%s9 + $0x78] sm:$0xff]
  %v416 = vld [vmem:[%s10] sm:$0x1]
  %v418 = vlaneseq
  %v419 = vshrl.u32 %v418, 7
  %v420 = vsub.s32 0, %v419
  %v421 = vrot.slane %v416, %v420
  %423 = vmatprep.subr.mxu0 0.0
  %424 = vmatpush1.msra.mxu0 %v415
  %425 = vmatprep.subr.mxu0 0.0
  %426 = vmatpush1.msra.mxu0 %v414
  %427 = vmatprep.subr.mxu0 0.0
  %428 = vmatpush1.msra.mxu0 %v413
  %429 = vmatprep.subr.mxu0 0.0
  %430 = vmatpush1.msra.mxu0 %v412
  %431 = vmatprep.subr.mxu0 0.0
  %432 = vmatpush1.msra.mxu0 %v411
  %433 = vmatprep.subr.mxu0 0.0
  %434 = vmatpush1.msra.mxu0 %v410
  %435 = vmatprep.subr.mxu0 0.0
  %436 = vmatpush1.msra.mxu0 %v409
  %437 = vmatprep.subr.mxu0 0.0
  %438 = vmatpush1.msra.mxu0 %v408
  %439 = vmatprep.subr.mxu0 0.0
  %440 = vmatpush1.msra.mxu0 %v407
  %441 = vmatprep.subr.mxu0 0.0
  %442 = vmatpush1.msra.mxu0 %v406
  %443 = vmatprep.subr.mxu0 0.0
  %444 = vmatpush1.msra.mxu0 %v405
  %445 = vmatprep.subr.mxu0 0.0
  %446 = vmatpush1.msra.mxu0 %v404
  %447 = vmatprep.subr.mxu0 0.0
  %448 = vmatpush1.msra.mxu0 %v403
  %449 = vmatprep.subr.mxu0 0.0
  %450 = vmatpush1.msra.mxu0 %v402
  %451 = vmatprep.subr.mxu0 0.0
  %452 = vmatpush1.msra.mxu0 %v401
  %453 = vmatprep.subr.mxu0 0.0
  %454 = vmatpush1.msra.mxu0 %v400
  %455 = vmatprep.subr.mxu0 0.0
  %456 = vmatpush2.msra.mxu0 0.0
  %457 = vmatprep.subr.mxu0 0.0
  %458 = vmatpush2.msra.mxu0 0.0
  %459 = vmatprep.subr.mxu0 0.0
  %460 = vmatpush2.msra.mxu0 0.0
  %461 = vmatprep.subr.mxu0 0.0
  %462 = vmatpush2.msra.mxu0 0.0
  %463 = vmatprep.subr.mxu0 0.0
  %464 = vmatpush2.msra.mxu0 0.0
  %465 = vmatprep.subr.mxu0 0.0
  %466 = vmatpush2.msra.mxu0 0.0
  %467 = vmatprep.subr.mxu0 0.0
  %468 = vmatpush2.msra.mxu0 0.0
  %469 = vmatprep.subr.mxu0 0.0
  %470 = vmatpush2.msra.mxu0 0.0
  %471 = vmatprep.subr.mxu0 0.0
  %472 = vmatpush2.msra.mxu0 0.0
  %473 = vmatprep.subr.mxu0 0.0
  %474 = vmatpush2.msra.mxu0 0.0
  %475 = vmatprep.subr.mxu0 0.0
  %476 = vmatpush2.msra.mxu0 0.0
  %477 = vmatprep.subr.mxu0 0.0
  %478 = vmatpush2.msra.mxu0 0.0
  %479 = vmatprep.subr.mxu0 0.0
  %480 = vmatpush2.msra.mxu0 0.0
  %481 = vmatprep.subr.mxu0 0.0
  %482 = vmatpush2.msra.mxu0 0.0
  %483 = vmatprep.subr.mxu0 0.0
  %484 = vmatpush2.msra.mxu0 0.0
  %485 = vmatprep.subr.mxu0 0.0
  %486 = vmatpush2.msra.mxu0 0.0
  %487 = vmatprep.mubr.f32.mxu0 0.0
  %488 = vmatmul.mubr.f32.gmra.mxu0 %v399
  %v489 = vpop.f32.mrf.mxu0
  %v490 = vadd.f32 %v421, %v489
  %v491 = vpop.f32.mrf.mxu0
  %492 = vdwg.mxu0
  %vm493 = vcmask 15360
  %494 = vst.msk [vmem:[%s11] sm:$0xff] %vm493, %v490
  // Predicated region
  $region46: #{qnetwork_forward.1} parent=0 // pred_check
    _
  $region47: #{qnetwork_forward.1} parent=0 // pred_check_branch
    %496 = sbr.rel (0) target = $region49
  $region48: #{qnetwork_forward.1} parent=0 // pred_region
    _
  $region49: #{qnetwork_forward.1} parent=0 // pred_fallthru
    _
  // Predicated region
  $region50: #{qnetwork_forward.1} parent=0 // pred_check
    _
  $region51: #{qnetwork_forward.1} parent=0 // pred_check_branch
    %498 = sbr.rel (0) target = $region53
  $region52: #{qnetwork_forward.1} parent=0 // pred_region
    _
  $region53: #{qnetwork_forward.1} parent=0 // pred_fallthru
    _

</llo_original>
